<compile_context>
chip_gen: v6e
topology: v6e:2x2x1
jax: 0.10.0
libtpu: 0.0.40
codegen_flags: <defaults>
</compile_context>

<pallas_src>
from functools import partial

import jax
import jax.numpy as jnp
from jax.experimental import pallas as pl
from jax.experimental.pallas import tpu as pltpu

F32 = jnp.float32
BF16 = jnp.bfloat16

_VMEM_LIMIT_ATTN = 48 * 1024 * 1024   # big fused Attention_Block weight


# ----------------------------------------------------------------------------
# in-kernel helpers
# ----------------------------------------------------------------------------
def _gelu_tanh(x):
    # TODO(synk): tanh approximation of the exact-erf nn.GELU
    return 0.5 * x * (1.0 + jnp.tanh(0.7978845608028654 *
                                     (x + 0.044715 * x * x * x)))


def _layernorm(x, g, b, eps):
    mu = jnp.mean(x, axis=-1, keepdims=True)
    xc = x - mu
    var = jnp.mean(xc * xc, axis=-1, keepdims=True)
    return xc * jax.lax.rsqrt(var + eps) * g + b


def _softmax_rows(s):
    s = s - jnp.max(s, axis=-1, keepdims=True)
    p = jnp.exp(s)
    return p * pl.reciprocal(jnp.sum(p, axis=-1, keepdims=True), approx=True)


def _mm(a, b):  # a @ b, f32 accumulation
    return jax.lax.dot_general(a.astype(BF16), b.astype(BF16),
                               (((1,), (0,)), ((), ())),
                               preferred_element_type=F32)


def _mm_t(a, b):  # a @ b.T, f32 accumulation
    return jax.lax.dot_general(a.astype(BF16), b.astype(BF16),
                               (((1,), (1,)), ((), ())),
                               preferred_element_type=F32)


# ----------------------------------------------------------------------------
# kernel 1: fused timm vision_transformer.Block
# ----------------------------------------------------------------------------
def _block_kernel(x_ref, n1g_ref, n1b_ref, wqkv_ref, bqkv_ref, wpt_ref, bproj_ref,
                  n2g_ref, n2b_ref, wfc1_ref, bfc1_ref, wfc2_ref, bfc2_ref,
                  o_ref, *, heads, eps):
    x = x_ref[0].astype(F32)                                   # (N, D)
    D = x.shape[1]
    hd = D // heads
    scale = float(hd) ** -0.5

    h = _layernorm(x, n1g_ref[...], n1b_ref[...], eps)
    qkv = _mm(h, wqkv_ref[...]) + bqkv_ref[...]                # (N, 3D)

    wpt = wpt_ref[...]                                         # (D_out, D_in) = proj W^T
    proj = jnp.zeros_like(x)
    for i in range(heads):
        q = qkv[:, i * hd:(i + 1) * hd]
        k = qkv[:, D + i * hd:D + (i + 1) * hd]
        v = qkv[:, 2 * D + i * hd:2 * D + (i + 1) * hd]
        s = _mm_t(q, k) * scale                                # (N, N)
        p = _softmax_rows(s)
        oh = _mm(p, v)                                         # (N, hd)
        # accumulate the projection per head (avoids a lane concatenate)
        proj = proj + _mm_t(oh, wpt[:, i * hd:(i + 1) * hd])   # (N, D)
    x = x + proj + bproj_ref[...]

    # TODO(synk): attn_drop / proj_drop / drop_path treated as identity (eval mode)
    h2 = _layernorm(x, n2g_ref[...], n2b_ref[...], eps)
    h2 = _mm(h2, wfc1_ref[...]) + bfc1_ref[...]
    h2 = _gelu_tanh(h2)
    h2 = _mm(h2, wfc2_ref[...]) + bfc2_ref[...]
    o_ref[0] = (x + h2).astype(o_ref.dtype)


_BLOCK_CACHE = {}


def _get_block_call(B, N, D, heads, eps):
    key = (B, N, D, heads, eps)
    fn = _BLOCK_CACHE.get(key)
    if fn is None:
        row = lambda b: (0, 0)
        fn = jax.jit(pl.pallas_call(
            partial(_block_kernel, heads=heads, eps=eps),
            out_shape=jax.ShapeDtypeStruct((B, N, D), F32),
            grid_spec=pltpu.PrefetchScalarGridSpec(
                num_scalar_prefetch=0,
                grid=(B,),
                in_specs=[
                    pl.BlockSpec((1, N, D), lambda b: (b, 0, 0)),   # x
                    pl.BlockSpec((1, D), row),                      # n1 gamma
                    pl.BlockSpec((1, D), row),                      # n1 beta
                    pl.BlockSpec((D, 3 * D), row),                  # qkv W
                    pl.BlockSpec((1, 3 * D), row),                  # qkv b
                    pl.BlockSpec((D, D), row),                      # proj W^T
                    pl.BlockSpec((1, D), row),                      # proj b
                    pl.BlockSpec((1, D), row),                      # n2 gamma
                    pl.BlockSpec((1, D), row),                      # n2 beta
                    pl.BlockSpec((D, 4 * D), row),                  # fc1 W
                    pl.BlockSpec((1, 4 * D), row),                  # fc1 b
                    pl.BlockSpec((4 * D, D), row),                  # fc2 W
                    pl.BlockSpec((1, D), row),                      # fc2 b
                ],
                out_specs=pl.BlockSpec((1, N, D), lambda b: (b, 0, 0)),
            ),
            compiler_params=pltpu.CompilerParams(
                dimension_semantics=("parallel",)),
        ))
        _BLOCK_CACHE[key] = fn
    return fn


def timm_block(x, p, num_heads, eps):
    B, N, D = x.shape
    fn = _get_block_call(B, N, D, num_heads, float(eps))
    return fn(x.astype(F32),
              p["n1_g"], p["n1_b"], p["qkv_w"], p["qkv_b"],
              p["proj_wt"], p["proj_b"], p["n2_g"], p["n2_b"],
              p["fc1_w"], p["fc1_b"], p["fc2_w"], p["fc2_b"])


# ----------------------------------------------------------------------------
# kernel 2: fused MAL Attention_Block (fused q|k|v Linear + attention)
# ----------------------------------------------------------------------------
def _attnblock_kernel(x_ref, w_ref, b_ref, o_ref, *, scale):
    x = x_ref[0].astype(F32)                                   # (C, N)
    N = x.shape[1]
    qkv = _mm(x, w_ref[...]) + b_ref[...]                      # (C, 3N)
    q = qkv[:, :N]
    k = qkv[:, N:2 * N]
    v = qkv[:, 2 * N:]
    s = _mm_t(q, k) * scale                                    # (C, C)
    p = _softmax_rows(s)
    o_ref[0] = _mm(p, v).astype(o_ref.dtype)                   # (C, N)


_ATTNBLOCK_CACHE = {}


def _get_attnblock_call(B, C, N):
    key = (B, C, N)
    fn = _ATTNBLOCK_CACHE.get(key)
    if fn is None:
        fn = jax.jit(pl.pallas_call(
            partial(_attnblock_kernel, scale=float(N) ** -0.5),
            out_shape=jax.ShapeDtypeStruct((B, C, N), F32),
            grid_spec=pltpu.PrefetchScalarGridSpec(
                num_scalar_prefetch=0,
                grid=(B,),
                in_specs=[
                    pl.BlockSpec((1, C, N), lambda b: (b, 0, 0)),
                    pl.BlockSpec((N, 3 * N), lambda b: (0, 0)),
                    pl.BlockSpec((1, 3 * N), lambda b: (0, 0)),
                ],
                out_specs=pl.BlockSpec((1, C, N), lambda b: (b, 0, 0)),
            ),
            compiler_params=pltpu.CompilerParams(
                dimension_semantics=("parallel",),
                vmem_limit_bytes=_VMEM_LIMIT_ATTN),
        ))
        _ATTNBLOCK_CACHE[key] = fn
    return fn


def attention_block_forward(x, p):
    """Attention_Block: x (B, C, N)."""
    B, C, N = x.shape
    y = _get_attnblock_call(B, C, N)(x.astype(F32), p["w"], p["b"])
    # faithful to torch: (attn @ v).transpose(1, 2).reshape(B, C, N)
    y = jnp.swapaxes(y, 1, 2).reshape(B, C, N)
    # TODO(synk): proj_drop treated as identity (eval mode)
    return y + x


# ----------------------------------------------------------------------------
# kernel 3: Self_Attention (fused 1x1 qkv conv + spatial attention), batched
#           over (feature_num * batch) with per-feature weights
# ----------------------------------------------------------------------------
def _sa_kernel(x_ref, w_ref, b_ref, g_ref, o_ref, *, qd):
    x = x_ref[0].astype(F32)                                   # (wh, C)
    qkv = _mm(x, w_ref[0]) + b_ref[0]                          # (wh, 2qd + C)
    q = qkv[:, :qd]
    k = qkv[:, qd:2 * qd]
    v = qkv[:, 2 * qd:]
    s = _mm_t(q, k)                                            # (wh, wh)
    p = _softmax_rows(s)
    o = _mm(p, v)                                              # (wh, C)
    o_ref[0] = (g_ref[0] * o + x).astype(o_ref.dtype)


_SA_CACHE = {}


def _get_sa_call(G, batch, wh, C, qd):
    key = (G, batch, wh, C)
    fn = _SA_CACHE.get(key)
    if fn is None:
        wdim = 2 * qd + C
        fn = jax.jit(pl.pallas_call(
            partial(_sa_kernel, qd=qd),
            out_shape=jax.ShapeDtypeStruct((G, wh, C), F32),
            grid_spec=pltpu.PrefetchScalarGridSpec(
                num_scalar_prefetch=0,
                grid=(G,),
                in_specs=[
                    pl.BlockSpec((1, wh, C), lambda g: (g, 0, 0)),
                    pl.BlockSpec((1, C, wdim), lambda g: (g // batch, 0, 0)),
                    pl.BlockSpec((1, 1, wdim), lambda g: (g // batch, 0, 0)),
                    pl.BlockSpec((1, 1, C), lambda g: (g // batch, 0, 0)),
                ],
                out_specs=pl.BlockSpec((1, wh, C), lambda g: (g, 0, 0)),
            ),
            compiler_params=pltpu.CompilerParams(
                dimension_semantics=("parallel",)),
        ))
        _SA_CACHE[key] = fn
    return fn


def mal_self_attention(features, sa):
    """Run all Self_Attention modules of a MAL in one batched launch."""
    fnum = len(features)
    b, C, H, W = features[0].shape
    wh = H * W
    qd = C // 8
    px = jnp.stack([jnp.transpose(f.reshape(b, C, wh), (0, 2, 1)) for f in features],
                   axis=0).reshape(fnum * b, wh, C)
    out = _get_sa_call(fnum * b, b, wh, C, qd)(px.astype(F32),
                                               sa["w"], sa["b"], sa["gamma"])
    out = out.reshape(fnum, b, wh, C)
    return jnp.transpose(out, (0, 1, 3, 2))                    # (n, b, C, wh)


# ----------------------------------------------------------------------------
# kernel 4: matmul + bias + optional ReLU (patch embed / im2col convolutions)
# ----------------------------------------------------------------------------
def _linear_kernel(x_ref, w_ref, b_ref, o_ref, *, act):
    y = jnp.dot(x_ref[...], w_ref[...], preferred_element_type=F32) + b_ref[...]
    if act == "relu":
        y = jnp.maximum(y, 0.0)
    o_ref[...] = y.astype(o_ref.dtype)


_LINEAR_CACHE = {}


def _get_linear_call(M, K, N, act, tm):
    key = (M, K, N, act, tm)
    fn = _LINEAR_CACHE.get(key)
    if fn is None:
        fn = jax.jit(pl.pallas_call(
            partial(_linear_kernel, act=act),
            out_shape=jax.ShapeDtypeStruct((M, N), F32),
            grid_spec=pltpu.PrefetchScalarGridSpec(
                num_scalar_prefetch=0,
                grid=(M // tm,),
                in_specs=[
                    pl.BlockSpec((tm, K), lambda i: (i, 0)),
                    pl.BlockSpec((K, N), lambda i: (0, 0)),
                    pl.BlockSpec((1, N), lambda i: (0, 0)),
                ],
                out_specs=pl.BlockSpec((tm, N), lambda i: (i, 0)),
            ),
            compiler_params=pltpu.CompilerParams(
                dimension_semantics=("parallel",)),
        ))
        _LINEAR_CACHE[key] = fn
    return fn


def pallas_linear(x, w, b, act="none"):
    M, K = x.shape
    N = w.shape[1]
    # >= 2 parallel grid steps when M allows it (keeps both v7x TCs busy)
    tm = M // 2 if (M >= 256 and M % 16 == 0) else M
    return _get_linear_call(M, K, N, act, tm)(x.astype(BF16), w, b)


# ----------------------------------------------------------------------------
# kernel 5: fused 128 -> 64 (gelu) -> 128 MLP
# ----------------------------------------------------------------------------
def _mlp_kernel(x_ref, w1_ref, b1_ref, w2_ref, b2_ref, o_ref):
    x = x_ref[...].astype(F32)
    h = _mm(x, w1_ref[...]) + b1_ref[...]
    h = _gelu_tanh(h)
    o_ref[...] = (_mm(h, w2_ref[...]) + b2_ref[...]).astype(o_ref.dtype)


_MLP_CACHE = {}


def pallas_mlp(x, p):
    M, D = x.shape
    H = p["w1"].shape[1]
    O = p["w2"].shape[1]
    key = (M, D, H, O)
    fn = _MLP_CACHE.get(key)
    if fn is None:
        full = lambda i: (0, 0)
        fn = jax.jit(pl.pallas_call(
            _mlp_kernel,
            out_shape=jax.ShapeDtypeStruct((M, O), F32),
            grid_spec=pltpu.PrefetchScalarGridSpec(
                num_scalar_prefetch=0,
                grid=(1,),
                in_specs=[pl.BlockSpec((M, D), full),
                          pl.BlockSpec((D, H), full), pl.BlockSpec((1, H), full),
                          pl.BlockSpec((H, O), full), pl.BlockSpec((1, O), full)],
                out_specs=pl.BlockSpec((M, O), full),
            ),
            compiler_params=pltpu.CompilerParams(
                dimension_semantics=("arbitrary",)),
        ))
        _MLP_CACHE[key] = fn
    return fn(x.astype(F32), p["w1"], p["b1"], p["w2"], p["b2"])


# ----------------------------------------------------------------------------
# kernel 6: fused final LayerNorm + score head (Linear/ReLU/Linear/Sigmoid)
# ----------------------------------------------------------------------------
def _head_kernel(x_ref, g_ref, b_ref, w1_ref, b1_ref, w2_ref, b2_ref, o_ref, *, eps):
    x = x_ref[...].astype(F32)
    h = _layernorm(x, g_ref[...], b_ref[...], eps)
    h = _mm(h, w1_ref[...]) + b1_ref[...]
    h = jnp.maximum(h, 0.0)
    # TODO(synk): nn.Dropout in score_block treated as identity (eval mode)
    y = _mm(h, w2_ref[...]) + b2_ref[...]
    o_ref[...] = (1.0 / (1.0 + jnp.exp(-y))).astype(o_ref.dtype)


_HEAD_CACHE = {}


def pallas_head(x, norm_p, score_p, eps=1e-5):
    M, D = x.shape
    H = score_p["w1"].shape[1]
    key = (M, D, H)
    fn = _HEAD_CACHE.get(key)
    if fn is None:
        full = lambda i: (0, 0)
        fn = jax.jit(pl.pallas_call(
            partial(_head_kernel, eps=eps),
            out_shape=jax.ShapeDtypeStruct((M, 1), F32),
            grid_spec=pltpu.PrefetchScalarGridSpec(
                num_scalar_prefetch=0,
                grid=(1,),
                in_specs=[pl.BlockSpec((M, D), full),
                          pl.BlockSpec((1, D), full), pl.BlockSpec((1, D), full),
                          pl.BlockSpec((D, H), full), pl.BlockSpec((1, H), full),
                          pl.BlockSpec((H, 1), full), pl.BlockSpec((1, 1), full)],
                out_specs=pl.BlockSpec((M, 1), full),
            ),
            compiler_params=pltpu.CompilerParams(
                dimension_semantics=("arbitrary",)),
        ))
        _HEAD_CACHE[key] = fn
    return fn(x.astype(F32), norm_p["g"], norm_p["b"],
              score_p["w1"], score_p["b1"], score_p["w2"], score_p["b2"])


# ----------------------------------------------------------------------------
# model glue
# ----------------------------------------------------------------------------
def mal_forward(features, p):
    """MAL: feature_num arrays (b, C, fs, fs) -> (b, C, fs*fs)."""
    n = len(features)
    b, C, H, W = features[0].shape
    wh = H * W
    feat = mal_self_attention(features, p["sa"])               # (n, b, C, wh)
    # 'n b c w h -> b (n c) (w h)'
    input_tensor = jnp.transpose(feat, (1, 0, 2, 3)).reshape(b, n * C, wh)
    # 'b (w c) h -> b w (c h)' with w=in_dim, c=feature_num (as written in torch)
    in_feature = input_tensor.reshape(b, C, n, wh).reshape(b, C, n * wh)
    fws = attention_block_forward(in_feature, p["feat"])       # (b, C, n*wh)
    in_channel = jnp.transpose(input_tensor, (0, 2, 1))        # (b, wh, n*C)
    cws = attention_block_forward(in_channel, p["chan"])       # (b, wh, n*C)
    a = fws.reshape(b, C, n, wh).reshape(b, C * n, wh)
    bb = jnp.transpose(cws, (0, 2, 1))
    wsr = (a + bb) * 0.5
    return wsr.reshape(b, n, C, wh).mean(axis=1)               # (b, C, wh)


@partial(jax.jit, static_argnums=(1,))
def _im2col(x, k):
    b, Cin, H, W = x.shape
    Ho, Wo = H - k + 1, W - k + 1
    cols = [x[:, :, i:i + Ho, j:j + Wo] for i in range(k) for j in range(k)]
    patches = jnp.stack(cols, axis=2)                          # (b, Cin, k*k, Ho, Wo)
    return jnp.transpose(patches, (0, 3, 4, 1, 2)).reshape(b * Ho * Wo, Cin * k * k)


def conv_matmul(x, cp, k):
    """Conv2d(kxk, VALID) + folded BN (eval) + ReLU via im2col + Pallas matmul."""
    b, Cin, H, W = x.shape
    Ho, Wo = H - k + 1, W - k + 1
    Y = pallas_linear(_im2col(x, k), cp["w"], cp["b"], act="relu")
    return jnp.transpose(Y.reshape(b, Ho, Wo, -1), (0, 3, 1, 2))


def avgpool(x, k):
    b, C, H, W = x.shape
    Ho, Wo = H // k, W // k
    x = x[:, :, :Ho * k, :Wo * k]
    return x.reshape(b, C, Ho, k, Wo, k).mean(axis=(3, 5))


def cnn_forward(x, convs):
    x = conv_matmul(x, convs[0], 5); x = avgpool(x, 2)
    x = conv_matmul(x, convs[1], 3); x = avgpool(x, 2)
    x = conv_matmul(x, convs[2], 3)
    # TODO(synk): final AvgPool2d((3,3)) implemented as a global average pool
    return jnp.mean(x, axis=(2, 3))                            # (b, 128)


def vit_forward(x, p, dim, patch, num_heads):
    """Synthetic ViT backbone; returns all 12 block outputs (forward hooks)."""
    B, C, H, W = x.shape
    gh, gw = H // patch, W // patch
    patches = x.reshape(B, C, gh, patch, gw, patch)
    patches = jnp.transpose(patches, (0, 2, 4, 1, 3, 5)).reshape(
        B * gh * gw, C * patch * patch)
    tok = pallas_linear(patches, p["patch"]["w"], p["patch"]["b"]).reshape(
        B, gh * gw, dim)
    cls = jnp.broadcast_to(p["cls"], (B, 1, dim))
    h = jnp.concatenate([cls, tok], axis=1) + p["pos"]
    outs = []
    for blk in p["blocks"]:
        h = timm_block(h, blk, num_heads, eps=1e-6)
        outs.append(h)
    return outs


def extract_feature(outs, block_index=(2, 5, 8, 11)):
    return jnp.concatenate([outs[i][:, 1:] for i in block_index], axis=2)


def expand_fn(A):
    """PromptIQA.expand: leave-one-out rows."""
    b = A.shape[0]
    rows = [jnp.concatenate([A[:i], A[i + 1:]], axis=0) for i in range(b)]
    return jnp.stack(rows, axis=0)                             # (b, b-1, D)


# ----------------------------------------------------------------------------
# full PromptIQA forward
# ----------------------------------------------------------------------------
def promptiqa_forward(p, x, score, *, dim_mlp, input_size, patch):
    b = x.shape[0]
    outs = vit_forward(x, p["vit"], dim_mlp, patch=patch, num_heads=12)
    feats = extract_feature(outs)                              # (b, wh, 4*dim)
    xf = jnp.transpose(feats, (0, 2, 1))                       # (b, 4*dim, wh)
    xf = xf.reshape(b, 4, dim_mlp, input_size, input_size)
    xf = jnp.transpose(xf, (1, 0, 2, 3, 4))                    # (4, b, dim, s, s)
    feat_list = [xf[i] for i in range(4)]

    DOF = [mal_forward(feat_list, p["mals"][m]) for m in range(3)]      # (b,dim,wh)
    DOF = [d.reshape(b, dim_mlp, input_size, input_size) for d in DOF]

    fm = mal_forward(DOF, p["fusion_mal"])                     # (b, dim, wh)
    fm = jnp.transpose(fm, (0, 2, 1))                          # (b, wh, dim)
    IQ = timm_block(fm, p["block"], num_heads=12, eps=1e-5)
    IQ = jnp.transpose(IQ, (0, 2, 1)).reshape(b, dim_mlp, input_size, input_size)

    img_feature = cnn_forward(IQ, p["cnn"])                    # (b, 128)
    score_feature = jnp.broadcast_to(score, (b, 128))          # expand(-1, 128)

    ff = jnp.concatenate([img_feature[:, None, :], score_feature[:, None, :]],
                         axis=1)                               # (b, 2, 128)
    for blk in p["i_p_fusion"]:
        ff = timm_block(ff, blk, 4, eps=1e-5)
    ff = jnp.mean(ff, axis=1)                                  # (b, 128)
    ff = pallas_mlp(ff, p["mlp"])                              # (b, 128)
    ff = expand_fn(ff)                                         # (b, b-1, 128)
    for blk in p["prompt_fusion"]:
        ff = timm_block(ff, blk, 4, eps=1e-5)

    fusion = jnp.concatenate([img_feature[:, None, :], ff], axis=1)     # (b, b, 128)
    for blk in p["blocks"]:
        fusion = timm_block(fusion, blk, 4, eps=1e-6)
    B_, N_, D_ = fusion.shape
    h = pallas_head(fusion.reshape(B_ * N_, D_), p["norm"], p["score"], eps=1e-5)
    h = h.reshape(B_, N_, 1)
    iq_res = h[:, 0].reshape(-1)
    gt_res = score.reshape(-1)
    return iq_res, gt_res


# ----------------------------------------------------------------------------
# deterministic parameter construction (matmul weights bf16, biases/LN f32)
# ----------------------------------------------------------------------------
class KeyGen:
    def __init__(self, seed):
        self.key = jax.random.PRNGKey(seed)

    def __call__(self):
        self.key, sub = jax.random.split(self.key)
        return sub


def init_params(seed=0, dim=48, feature_size=20, img_size=80, patch=4, depth=12):
    kg = KeyGen(seed)

    def nrm(shape, std=0.02):
        return std * jax.random.normal(kg(), shape, F32)

    def lin(din, dout):
        return {"w": nrm((din, dout)).astype(BF16), "b": jnp.zeros((1, dout), F32)}

    def block(d, mlp_ratio=4):
        hdim = d * mlp_ratio
        return {
            "n1_g": jnp.ones((1, d), F32), "n1_b": jnp.zeros((1, d), F32),
            "qkv_w": nrm((d, 3 * d)).astype(BF16), "qkv_b": jnp.zeros((1, 3 * d), F32),
            # projection weight stored transposed (D_out, D_in): per-head lane slices
            "proj_wt": nrm((d, d)).astype(BF16), "proj_b": jnp.zeros((1, d), F32),
            "n2_g": jnp.ones((1, d), F32), "n2_b": jnp.zeros((1, d), F32),
            "fc1_w": nrm((d, hdim)).astype(BF16), "fc1_b": jnp.zeros((1, hdim), F32),
            "fc2_w": nrm((hdim, d)).astype(BF16), "fc2_b": jnp.zeros((1, d), F32),
        }

    def attn_block(d):
        # fused q|k|v Linear weights of Attention_Block
        return {"w": nrm((d, 3 * d)).astype(BF16), "b": jnp.zeros((1, 3 * d), F32)}

    def self_attn_stack(c, fnum):
        qd = c // 8
        # fused q|k|v 1x1 conv; torch inits gamma to 0 - use 0.1 so the attention
        # path contributes to the output (synthetic weights).
        return {"w": nrm((fnum, c, 2 * qd + c)).astype(BF16),
                "b": jnp.zeros((fnum, 1, 2 * qd + c), F32),
                "gamma": jnp.full((fnum, 1, c), 0.1, F32)}

    def mal(in_dim, fnum, fsize):
        return {"sa": self_attn_stack(in_dim, fnum),
                "chan": attn_block(in_dim * fnum),
                "feat": attn_block(fsize * fsize * fnum)}

    def conv(cout, cin, k):
        w = nrm((cout, cin, k, k))
        bias = jnp.zeros((cout,), F32)
        # TODO(synk): BatchNorm2d folded with synthetic running stats (eval mode)
        gamma = jnp.ones((cout,), F32)
        beta = jnp.zeros((cout,), F32)
        mean = jnp.zeros((cout,), F32)
        var = jnp.ones((cout,), F32)
        scale = gamma / jnp.sqrt(var + 1e-5)
        wf = (w * scale[:, None, None, None]).reshape(cout, cin * k * k).T
        bf = (bias - mean) * scale + beta
        return {"w": wf.astype(BF16), "b": bf.reshape(1, cout)}

    n_tok = (img_size // patch) ** 2 + 1
    return {
        "vit": {"patch": lin(3 * patch * patch, dim),
                "cls": nrm((1, 1, dim)),
                "pos": nrm((1, n_tok, dim)),
                "blocks": [block(dim) for _ in range(depth)]},
        "mals": [mal(dim, 4, feature_size) for _ in range(3)],
        "fusion_mal": mal(dim, 3, feature_size),
        "block": block(dim),
        "cnn": [conv(256, dim, 5), conv(128, 256, 3), conv(128, 128, 3)],
        "i_p_fusion": [block(128) for _ in range(3)],
        "mlp": {"w1": nrm((128, 64)).astype(BF16), "b1": jnp.zeros((1, 64), F32),
                "w2": nrm((64, 128)).astype(BF16), "b2": jnp.zeros((1, 128), F32)},
        "prompt_fusion": [block(128) for _ in range(3)],
        "blocks": [block(128) for _ in range(8)],
        "norm": {"g": jnp.ones((1, 128), F32), "b": jnp.zeros((1, 128), F32)},
        "score": {"w1": nrm((128, 64)).astype(BF16), "b1": jnp.zeros((1, 64), F32),
                  "w2": nrm((64, 1)).astype(BF16), "b2": jnp.zeros((1, 1), F32)},
    }


# ----------------------------------------------------------------------------
if __name__ == "__main__":
    B = 2
    IMG = 80          # smallest image size keeping the CNN stack valid
    PATCH = 4         # -> 20x20 token grid (input_size = 20)
    DIM = 48          # reduced embed dim (divisible by 12 heads and by 8)
    INPUT_SIZE = IMG // PATCH

    key = jax.random.PRNGKey(0)
    kx, ks = jax.random.split(key)
    x = jax.random.normal(kx, (B, 3, IMG, IMG), F32)
    score = jax.random.uniform(ks, (B, 1), F32)

    params = init_params(seed=0, dim=DIM, feature_size=INPUT_SIZE,
                         img_size=IMG, patch=PATCH, depth=12)

    iq_res, gt_res = promptiqa_forward(params, x, score,
                                       dim_mlp=DIM, input_size=INPUT_SIZE,
                                       patch=PATCH)
    jax.block_until_ready((iq_res, gt_res))

    assert iq_res.shape == (B,), iq_res.shape
    assert gt_res.shape == (B,), gt_res.shape
    assert bool(jnp.all(jnp.isfinite(iq_res)))
    print("KERNEL_OK")
</pallas_src>

<mosaic_0001>
module attributes {stable_mosaic.version = 11 : i64} {
  func.func @_linear_kernel(%arg0: i32, %arg1: memref<400x48xbf16, #tpu.memory_space<vmem>>, %arg2: memref<48x48xbf16, #tpu.memory_space<vmem>>, %arg3: memref<1x48xf32, #tpu.memory_space<vmem>>, %arg4: memref<400x48xf32, #tpu.memory_space<vmem>>) attributes {dimension_semantics = [#tpu.dimension_semantics<parallel>], iteration_bounds = array<i64: 2>, scalar_prefetch = 0 : i64, scratch_operands = 0 : i64, tpu.core_type = #tpu.core_type<tc>, window_params = [{transform_indices = @transform_0, window_bounds = array<i64: 400, 48>}, {pipeline_mode = #tpu.pipeline_mode<synchronous>, transform_indices = @transform_1, window_bounds = array<i64: 48, 48>}, {pipeline_mode = #tpu.pipeline_mode<synchronous>, transform_indices = @transform_2, window_bounds = array<i64: 1, 48>}, {transform_indices = @transform_3, window_bounds = array<i64: 400, 48>}]} {
    %c0 = arith.constant 0 : index
    %c0_0 = arith.constant 0 : index
    %0 = vector.load %arg1[%c0, %c0_0] : memref<400x48xbf16, #tpu.memory_space<vmem>>, vector<400x48xbf16>
    %c0_1 = arith.constant 0 : index
    %c0_2 = arith.constant 0 : index
    %1 = vector.load %arg2[%c0_1, %c0_2] : memref<48x48xbf16, #tpu.memory_space<vmem>>, vector<48x48xbf16>
    %cst = arith.constant dense<0.000000e+00> : vector<400x48xf32>
    %2 = tpu.matmul %0, %1, %cst {dimension_numbers = #tpu.dot_dimension_numbers<[1], [0], [0], [1], [0, 0, 1, 1], [], []>} : vector<400x48xbf16>, vector<48x48xbf16>, vector<400x48xf32> -> vector<400x48xf32>
    %c0_3 = arith.constant 0 : index
    %c0_4 = arith.constant 0 : index
    %3 = vector.load %arg3[%c0_3, %c0_4] : memref<1x48xf32, #tpu.memory_space<vmem>>, vector<1x48xf32>
    %4 = vector.broadcast %3 : vector<1x48xf32> to vector<400x48xf32>
    %5 = arith.addf %2, %4 : vector<400x48xf32>
    %c0_5 = arith.constant 0 : index
    %c0_6 = arith.constant 0 : index
    %6 = vector.load %arg4[%c0_5, %c0_6] : memref<400x48xf32, #tpu.memory_space<vmem>>, vector<400x48xf32>
    tpu.vector_store %arg4[%c0_5, %c0_6], %5 {strides = array<i32>} : memref<400x48xf32, #tpu.memory_space<vmem>>, vector<400x48xf32>,
    return
  }
  func.func @transform_0(%arg0: i32) -> (i32, i32) {
    %c0_i32 = arith.constant 0 : i32
    %c0_i32_0 = arith.constant 0 : i32
    return %arg0, %c0_i32 : i32, i32
  }
  func.func @transform_1(%arg0: i32) -> (i32, i32) {
    %c0_i32 = arith.constant 0 : i32
    %c0_i32_0 = arith.constant 0 : i32
    %c0_i32_1 = arith.constant 0 : i32
    return %c0_i32, %c0_i32_0 : i32, i32
  }
  func.func @transform_2(%arg0: i32) -> (i32, i32) {
    %c0_i32 = arith.constant 0 : i32
    %c0_i32_0 = arith.constant 0 : i32
    %c0_i32_1 = arith.constant 0 : i32
    return %c0_i32, %c0_i32_0 : i32, i32
  }
  func.func @transform_3(%arg0: i32) -> (i32, i32) {
    %c0_i32 = arith.constant 0 : i32
    %c0_i32_0 = arith.constant 0 : i32
    return %arg0, %c0_i32 : i32, i32
  }
}

</mosaic_0001>

<llo_original>
// kernel: tpu_custom_call.1
$region0: #{tpu_custom_call.1}
  #allocation0 [shape = 'u32[]', space=smem, size = 0x4, offset = 0x4, fixed_abs, tag = 'smem constant byte address 0x4 - core index']
  #allocation1 [shape = 'u32[144,128]{1,0:T(1,128)}', space=vmem, size = 0x12000, scoped, tag = 'internal scratch']
  %s0 = inlined_call_operand.vmem [shape: bf16[800,48], index: 0, kind: input, shape index: {}]
  %s1 = inlined_call_operand.vmem [shape: bf16[48,48], index: 1, kind: input, shape index: {}]
  %s2 = inlined_call_operand.vmem [shape: f32[1,48], index: 2, kind: input, shape index: {}]
  %s3 = inlined_call_operand.vmem [shape: f32[800,48], index: 3, kind: output, shape index: {}]
  %s4 = sld [smem:[#allocation0]]
  $region45: #{tpu_custom_call.1} parent=0
    _
  %s6 = ssub.s32 1, %s4
  %s7 = scalar_select 0, %s6, %s4
  loop: start=0, step=1, limit=4
  $region2: #{tpu_custom_call.1} parent=0 // loop_pre_header
    _
  $region3: #{tpu_custom_call.1} parent=0 // loop_header
    %s9 = sphi 0, %s13
    %p10 = scmp.ge.s32.totalorder %s9, 4
    %s19 = sphi 0, %s21
    %s22 = sphi 0, %s19
    %s23 = sphi 0, %s22
    %s39 = sphi 0, %s23
    %s43 = sphi 0, %s43
    %s45 = sphi 0, %s43
    %s46 = sphi 0, %s45
    %s60 = sphi 0, %s46
    %s64 = sphi 0, %s64
    %s66 = sphi 0, %s64
    %s67 = sphi 0, %s66
    %s81 = sphi 0, %s67
    %s87 = sphi 0, %s89
    %s90 = sphi 0, %s87
    %s91 = sphi 0, %s90
    %s107 = sphi 0, %s91
  $region4: #{tpu_custom_call.1} parent=0 // loop_header_branch
    %12 = sbr.rel (%p10) target = $region8
  $region5: #{tpu_custom_call.1} parent=0 // loop_body
    %s14 = ssub.s32 %s9, 1
    %s15 = ssub.s32 %s9, 2
    %s16 = sadd.s32 %s9, 1
    %s17 = ssub.s32 %s9, %s16
    %p18 = scmp.eq.s32.totalorder %s17, 0
    %s20 = sadd.s32 %s19, 1
    %s21 = scalar_select %p18, %s19, %s20
    %p24 = pneg %p18
    %p25 = scmp.eq.s32.totalorder %s9, 1
    %p26 = por %p24, %p25
    %p27 = scmp.ne.s32.totalorder %s19, %s22
    %p28 = scmp.eq.s32.totalorder %s9, 0
    %p29 = por %p27, %p28
    %p30 = scmp.ne.s32.totalorder %s19, %s22
    %p31 = scmp.eq.s32.totalorder %s14, 1
    %p32 = por %p30, %p31
    %p33 = scmp.ne.s32.totalorder %s22, %s23
    %p34 = scmp.eq.s32.totalorder %s14, 0
    %p35 = por %p33, %p34
    %p36 = scmp.ne.s32.totalorder %s22, %s23
    %p37 = scmp.eq.s32.totalorder %s15, 1
    %p38 = por %p36, %p37
    %p40 = scmp.ne.s32.totalorder %s23, %s39
    %p41 = scmp.eq.s32.totalorder %s15, 0
    %p42 = por %p40, %p41
    %s44 = sadd.s32 %s43, 1
    %p47 = scmp.eq.s32.totalorder %s9, 1
    %p48 = scmp.ne.s32.totalorder %s43, %s45
    %p49 = scmp.eq.s32.totalorder %s9, 0
    %p50 = por %p48, %p49
    %p51 = scmp.ne.s32.totalorder %s43, %s45
    %p52 = scmp.eq.s32.totalorder %s14, 1
    %p53 = por %p51, %p52
    %p54 = scmp.ne.s32.totalorder %s45, %s46
    %p55 = scmp.eq.s32.totalorder %s14, 0
    %p56 = por %p54, %p55
    %p57 = scmp.ne.s32.totalorder %s45, %s46
    %p58 = scmp.eq.s32.totalorder %s15, 1
    %p59 = por %p57, %p58
    %p61 = scmp.ne.s32.totalorder %s46, %s60
    %p62 = scmp.eq.s32.totalorder %s15, 0
    %p63 = por %p61, %p62
    %s65 = sadd.s32 %s64, 1
    %p68 = scmp.eq.s32.totalorder %s9, 1
    %p69 = scmp.ne.s32.totalorder %s64, %s66
    %p70 = scmp.eq.s32.totalorder %s9, 0
    %p71 = por %p69, %p70
    %p72 = scmp.ne.s32.totalorder %s64, %s66
    %p73 = scmp.eq.s32.totalorder %s14, 1
    %p74 = por %p72, %p73
    %p75 = scmp.ne.s32.totalorder %s66, %s67
    %p76 = scmp.eq.s32.totalorder %s14, 0
    %p77 = por %p75, %p76
    %p78 = scmp.ne.s32.totalorder %s66, %s67
    %p79 = scmp.eq.s32.totalorder %s15, 1
    %p80 = por %p78, %p79
    %p82 = scmp.ne.s32.totalorder %s67, %s81
    %p83 = scmp.eq.s32.totalorder %s15, 0
    %p84 = por %p82, %p83
    %s85 = ssub.s32 %s9, %s16
    %p86 = scmp.eq.s32.totalorder %s85, 0
    %s88 = sadd.s32 %s87, 1
    %s89 = scalar_select %p86, %s87, %s88
    %p92 = pneg %p86
    %p93 = scmp.eq.s32.totalorder %s9, 1
    %p94 = por %p92, %p93
    %p95 = scmp.ne.s32.totalorder %s87, %s90
    %p96 = scmp.eq.s32.totalorder %s9, 0
    %p97 = por %p95, %p96
    %p98 = scmp.ne.s32.totalorder %s87, %s90
    %p99 = scmp.eq.s32.totalorder %s14, 1
    %p100 = por %p98, %p99
    %p101 = scmp.ne.s32.totalorder %s90, %s91
    %p102 = scmp.eq.s32.totalorder %s14, 0
    %p103 = por %p101, %p102
    %p104 = scmp.ne.s32.totalorder %s90, %s91
    %p105 = scmp.eq.s32.totalorder %s15, 1
    %p106 = por %p104, %p105
    %p108 = scmp.ne.s32.totalorder %s91, %s107
    %p109 = scmp.eq.s32.totalorder %s15, 0
    %p110 = por %p108, %p109
    %p111 = scmp.le.s32.totalorder 1, %s9
    %p112 = scmp.lt.s32.totalorder %s9, 3
    %p113 = pnand %p111, %p112
    %p114 = pneg %p113
    // Predicated region
    $region9: #{tpu_custom_call.1} parent=5 // pred_check
      _
    $region10: #{tpu_custom_call.1} parent=5 // pred_check_branch
      %116 = sbr.rel (%p113) target = $region12
    $region11: #{tpu_custom_call.1} parent=5 // pred_region
      %s117 = ssub.s32 %s9, 1
      // Predicated region
      $region13: #{tpu_custom_call.1} parent=11 // pred_check
        %p118 = pneg %p56
      $region14: #{tpu_custom_call.1} parent=11 // pred_check_branch
        %120 = sbr.rel (%p118) target = $region16
      $region15: #{tpu_custom_call.1} parent=11 // pred_region
        _
      $region16: #{tpu_custom_call.1} parent=11 // pred_fallthru
        _
      // Predicated region
      $region17: #{tpu_custom_call.1} parent=11 // pred_check
        %p121 = pneg %p77
      $region18: #{tpu_custom_call.1} parent=11 // pred_check_branch
        %123 = sbr.rel (%p121) target = $region20
      $region19: #{tpu_custom_call.1} parent=11 // pred_region
        _
      $region20: #{tpu_custom_call.1} parent=11 // pred_fallthru
        _
    $region12: #{tpu_custom_call.1} parent=5 // pred_fallthru
      _
    %p124 = scmp.lt.s32.totalorder %s9, 2
    // Predicated region
    $region21: #{tpu_custom_call.1} parent=5 // pred_check
      %p125 = pneg %p124
    $region22: #{tpu_custom_call.1} parent=5 // pred_check_branch
      %127 = sbr.rel (%p125) target = $region24
    $region23: #{tpu_custom_call.1} parent=5 // pred_region
      // Predicated region
      $region25: #{tpu_custom_call.1} parent=23 // pred_check
        %p128 = pneg %p29
      $region26: #{tpu_custom_call.1} parent=23 // pred_check_branch
        %130 = sbr.rel (%p128) target = $region28
      $region27: #{tpu_custom_call.1} parent=23 // pred_region
        %s131 = smul.u32 50, %s9
        %p132 = scmp.lt.s32.totalorder %s131, 99
        %s133 = scalar_select %p132, %s131, 99
        %s134 = smul.addr %s133, 4
        %s135 = scalar_lea.vmem %s0, %s134
        %s136 = smul.u32 50, %s9
      $region28: #{tpu_custom_call.1} parent=23 // pred_fallthru
        _
    $region24: #{tpu_custom_call.1} parent=5 // pred_fallthru
      _
    %p137 = scmp.le.s32.totalorder 1, %s9
    %p138 = scmp.lt.s32.totalorder %s9, 3
    %p139 = pnand %p137, %p138
    %p140 = pneg %p139
    // Predicated region
    $region29: #{tpu_custom_call.1} parent=5 // pred_check
      _
    $region30: #{tpu_custom_call.1} parent=5 // pred_check_branch
      %142 = sbr.rel (%p139) target = $region32
    $region31: #{tpu_custom_call.1} parent=5 // pred_region
      %s143 = ssub.s32 %s9, 1
      %s144 = smul.u32 50, %s14
      %p145 = scmp.lt.s32.totalorder %s144, 99
      %s146 = scalar_select %p145, %s144, 99
      %s147 = smul.addr %s146, 4
      %s148 = scalar_lea.vmem %s0, %s147
      %p149 = pneg %p35
      %p150 = pneg %p32
      %p151 = pneg %p56
      %p152 = pneg %p53
      %p153 = pneg %p77
      %p154 = pneg %p74
      %p155 = pneg %p103
      %p156 = pneg %p100
      %s157 = smul.u32 50, %s14
      %p158 = scmp.lt.s32.totalorder %s157, 99
      %s159 = scalar_select %p158, %s157, 99
      %s160 = smul.addr %s159, 8
      %s161 = scalar_lea.vmem %s3, %s160
      %s162 = smul.u32 50, %s14
      %p163 = scmp.lt.s32.totalorder %s162, 99
      %s164 = scalar_select %p163, %s162, 99
      %s165 = smul.addr %s164, 4
      %s166 = scalar_lea.vmem %s0, %s165
      %s167 = smul.u32 50, %s14
      %s168 = smul.u32 50, %s14
      %p169 = scmp.lt.s32.totalorder %s168, 99
      %s170 = scalar_select %p169, %s168, 99
      %s171 = smul.addr %s170, 8
      %s172 = scalar_lea.vmem %s3, %s171
      %s173 = smul.u32 50, %s14
      %v175 = vld [vmem:[%s166] sm:$0xf]
      %v176 = vld [vmem:[%s166 + $0x4] sm:$0xf]
      %v177 = vld [vmem:[%s166 + $0x8] sm:$0xf]
      %v178 = vld [vmem:[%s166 + $0xc] sm:$0xf]
      %v179 = vld [vmem:[%s166 + $0x10] sm:$0xf]
      %v180 = vld [vmem:[%s166 + $0x14] sm:$0xf]
      %v181 = vld [vmem:[%s166 + $0x18] sm:$0xf]
      %v182 = vld [vmem:[%s166 + $0x1c] sm:$0xf]
      %v183 = vld [vmem:[%s166 + $0x20] sm:$0xf]
      %v184 = vld [vmem:[%s166 + $0x24] sm:$0xf]
      %v185 = vld [vmem:[%s166 + $0x28] sm:$0xf]
      %v186 = vld [vmem:[%s166 + $0x2c] sm:$0xf]
      %v187 = vld [vmem:[%s166 + $0x30] sm:$0xf]
      %v188 = vld [vmem:[%s166 + $0x34] sm:$0xf]
      %v189 = vld [vmem:[%s166 + $0x38] sm:$0xf]
      %v190 = vld [vmem:[%s166 + $0x3c] sm:$0xf]
      %v191 = vld [vmem:[%s166 + $0x40] sm:$0xf]
      %v192 = vld [vmem:[%s166 + $0x44] sm:$0xf]
      %v193 = vld [vmem:[%s166 + $0x48] sm:$0xf]
      %v194 = vld [vmem:[%s166 + $0x4c] sm:$0xf]
      %v195 = vld [vmem:[%s166 + $0x50] sm:$0xf]
      %v196 = vld [vmem:[%s166 + $0x54] sm:$0xf]
      %v197 = vld [vmem:[%s166 + $0x58] sm:$0xf]
      %v198 = vld [vmem:[%s166 + $0x5c] sm:$0xf]
      %v199 = vld [vmem:[%s166 + $0x60] sm:$0xf]
      %v200 = vld [vmem:[%s166 + $0x64] sm:$0xf]
      %v201 = vld [vmem:[%s166 + $0x68] sm:$0xf]
      %v202 = vld [vmem:[%s166 + $0x6c] sm:$0xf]
      %v203 = vld [vmem:[%s166 + $0x70] sm:$0xf]
      %v204 = vld [vmem:[%s166 + $0x74] sm:$0xf]
      %v205 = vld [vmem:[%s166 + $0x78] sm:$0xf]
      %v206 = vld [vmem:[%s166 + $0x7c] sm:$0xf]
      %v207 = vld [vmem:[%s166 + $0x80] sm:$0xf]
      %v208 = vld [vmem:[%s166 + $0x84] sm:$0xf]
      %v209 = vld [vmem:[%s166 + $0x88] sm:$0xf]
      %v210 = vld [vmem:[%s166 + $0x8c] sm:$0xf]
      %v211 = vld [vmem:[%s166 + $0x90] sm:$0xf]
      %v212 = vld [vmem:[%s166 + $0x94] sm:$0xf]
      %v213 = vld [vmem:[%s166 + $0x98] sm:$0xf]
      %v214 = vld [vmem:[%s166 + $0x9c] sm:$0xf]
      %v215 = vld [vmem:[%s166 + $0xa0] sm:$0xf]
      %v216 = vld [vmem:[%s166 + $0xa4] sm:$0xf]
      %v217 = vld [vmem:[%s166 + $0xa8] sm:$0xf]
      %v218 = vld [vmem:[%s166 + $0xac] sm:$0xf]
      %v219 = vld [vmem:[%s166 + $0xb0] sm:$0xf]
      %v220 = vld [vmem:[%s166 + $0xb4] sm:$0xf]
      %v221 = vld [vmem:[%s166 + $0xb8] sm:$0xf]
      %v222 = vld [vmem:[%s166 + $0xbc] sm:$0xf]
      %v223 = vld [vmem:[%s166 + $0xc0] sm:$0xf]
      %v224 = vld [vmem:[%s166 + $0xc4] sm:$0xf]
      %v225 = vld [vmem:[%s1] sm:$0xf]
      %v226 = vld [vmem:[%s1 + $0x4] sm:$0xf]
      %v227 = vld [vmem:[%s1 + $0x8] sm:$0xf]
      %v228 = vld [vmem:[%s1 + $0xc] sm:$0xf]
      %v229 = vld [vmem:[%s1 + $0x10] sm:$0xf]
      %v230 = vld [vmem:[%s1 + $0x14] sm:$0xf]
      %v231 = vld [vmem:[%s2] sm:$0x1]
      %v233 = vlaneseq
      %v234 = vshrl.u32 %v233, 7
      %v235 = vsub.s32 0, %v234
      %v236 = vrot.slane %v231, %v235
      %v288 = vunpack.c.l.b16 %v175
      %v289 = vunpack.c.l.b16 %v176
      %v290 = vunpack.c.l.b16 %v177
      %v291 = vunpack.c.l.b16 %v178
      %v292 = vunpack.c.l.b16 %v179
      %v293 = vunpack.c.l.b16 %v180
      %v294 = vunpack.c.l.b16 %v181
      %v295 = vunpack.c.l.b16 %v182
      %v296 = vunpack.c.l.b16 %v183
      %v297 = vunpack.c.l.b16 %v184
      %v298 = vunpack.c.l.b16 %v185
      %v299 = vunpack.c.l.b16 %v186
      %v300 = vunpack.c.l.b16 %v187
      %v301 = vunpack.c.l.b16 %v188
      %v302 = vunpack.c.l.b16 %v189
      %v303 = vunpack.c.l.b16 %v190
      %v304 = vunpack.c.l.b16 %v191
      %v305 = vunpack.c.l.b16 %v192
      %v306 = vunpack.c.l.b16 %v193
      %v307 = vunpack.c.l.b16 %v194
      %v308 = vunpack.c.l.b16 %v195
      %v309 = vunpack.c.l.b16 %v196
      %v310 = vunpack.c.l.b16 %v197
      %v311 = vunpack.c.l.b16 %v198
      %v312 = vunpack.c.l.b16 %v199
      %v313 = vunpack.c.l.b16 %v200
      %v314 = vunpack.c.l.b16 %v201
      %v315 = vunpack.c.l.b16 %v202
      %v316 = vunpack.c.l.b16 %v203
      %v317 = vunpack.c.l.b16 %v204
      %v318 = vunpack.c.l.b16 %v205
      %v319 = vunpack.c.l.b16 %v206
      %v320 = vunpack.c.l.b16 %v207
      %v321 = vunpack.c.l.b16 %v208
      %v322 = vunpack.c.l.b16 %v209
      %v323 = vunpack.c.l.b16 %v210
      %v324 = vunpack.c.l.b16 %v211
      %v325 = vunpack.c.l.b16 %v212
      %v326 = vunpack.c.l.b16 %v213
      %v327 = vunpack.c.l.b16 %v214
      %v328 = vunpack.c.l.b16 %v215
      %v329 = vunpack.c.l.b16 %v216
      %v330 = vunpack.c.l.b16 %v217
      %v331 = vunpack.c.l.b16 %v218
      %v332 = vunpack.c.l.b16 %v219
      %v333 = vunpack.c.l.b16 %v220
      %v334 = vunpack.c.l.b16 %v221
      %v335 = vunpack.c.l.b16 %v222
      %v336 = vunpack.c.l.b16 %v223
      %v337 = vunpack.c.l.b16 %v224
      %v338 = vpack.c.b16 %v289, %v288
      %v339 = vpack.c.b16 %v291, %v290
      %v340 = vpack.c.b16 %v293, %v292
      %v341 = vpack.c.b16 %v295, %v294
      %v342 = vpack.c.b16 %v297, %v296
      %v343 = vpack.c.b16 %v299, %v298
      %v344 = vpack.c.b16 %v301, %v300
      %v345 = vpack.c.b16 %v303, %v302
      %v346 = vpack.c.b16 %v305, %v304
      %v347 = vpack.c.b16 %v307, %v306
      %v348 = vpack.c.b16 %v309, %v308
      %v349 = vpack.c.b16 %v311, %v310
      %v350 = vpack.c.b16 %v313, %v312
      %v351 = vpack.c.b16 %v315, %v314
      %v352 = vpack.c.b16 %v317, %v316
      %v353 = vpack.c.b16 %v319, %v318
      %v354 = vpack.c.b16 %v321, %v320
      %v355 = vpack.c.b16 %v323, %v322
      %v356 = vpack.c.b16 %v325, %v324
      %v357 = vpack.c.b16 %v327, %v326
      %v358 = vpack.c.b16 %v329, %v328
      %v359 = vpack.c.b16 %v331, %v330
      %v360 = vpack.c.b16 %v333, %v332
      %v361 = vpack.c.b16 %v335, %v334
      %v362 = vpack.c.b16 %v337, %v336
      %v369 = vunpack.c.l.b16 %v225
      %v370 = vunpack.c.l.b16 %v226
      %v371 = vunpack.c.l.b16 %v227
      %v372 = vunpack.c.l.b16 %v228
      %v373 = vunpack.c.l.b16 %v229
      %v374 = vunpack.c.l.b16 %v230
      %v375 = vpack.c.b16 %v370, %v369
      %v376 = vpack.c.b16 %v372, %v371
      %v377 = vpack.c.b16 %v374, %v373
      %vm381 = vcmask 392192
      %v383 = vsel %vm381, %v338, 0
      %v386 = vsel %vm381, %v339, 0
      %v389 = vsel %vm381, %v340, 0
      %v392 = vsel %vm381, %v341, 0
      %v395 = vsel %vm381, %v342, 0
      %v398 = vsel %vm381, %v343, 0
      %v401 = vsel %vm381, %v344, 0
      %v404 = vsel %vm381, %v345, 0
      %v407 = vsel %vm381, %v346, 0
      %v410 = vsel %vm381, %v347, 0
      %v413 = vsel %vm381, %v348, 0
      %v416 = vsel %vm381, %v349, 0
      %v419 = vsel %vm381, %v350, 0
      %v422 = vsel %vm381, %v351, 0
      %v425 = vsel %vm381, %v352, 0
      %v428 = vsel %vm381, %v353, 0
      %v431 = vsel %vm381, %v354, 0
      %v434 = vsel %vm381, %v355, 0
      %v437 = vsel %vm381, %v356, 0
      %v440 = vsel %vm381, %v357, 0
      %v443 = vsel %vm381, %v358, 0
      %v446 = vsel %vm381, %v359, 0
      %v449 = vsel %vm381, %v360, 0
      %v452 = vsel %vm381, %v361, 0
      %v455 = vsel %vm381, %v362, 0
      %457 = vmatprep.subr.bf16.mxu0 0
      %458 = vmatpush1.bf16.msra.mxu0 0
      %459 = vmatprep.subr.bf16.mxu0 0
      %460 = vmatpush1.bf16.msra.mxu0 0
      %461 = vmatprep.subr.bf16.mxu0 0
      %462 = vmatpush1.bf16.msra.mxu0 0
      %463 = vmatprep.subr.bf16.mxu0 0
      %464 = vmatpush1.bf16.msra.mxu0 0
      %465 = vmatprep.subr.bf16.mxu0 0
      %466 = vmatpush1.bf16.msra.mxu0 0
      %467 = vmatprep.subr.bf16.mxu0 0
      %468 = vmatpush1.bf16.msra.mxu0 %v377
      %469 = vmatprep.subr.bf16.mxu0 0
      %470 = vmatpush1.bf16.msra.mxu0 %v376
      %471 = vmatprep.subr.bf16.mxu0 0
      %472 = vmatpush1.bf16.msra.mxu0 %v375
      %473 = vmatprep.subr.bf16.mxu0 0
      %474 = vmatpush2.bf16.msra.mxu0 0
      %475 = vmatprep.subr.bf16.mxu0 0
      %476 = vmatpush2.bf16.msra.mxu0 0
      %477 = vmatprep.subr.bf16.mxu0 0
      %478 = vmatpush2.bf16.msra.mxu0 0
      %479 = vmatprep.subr.bf16.mxu0 0
      %480 = vmatpush2.bf16.msra.mxu0 0
      %481 = vmatprep.subr.bf16.mxu0 0
      %482 = vmatpush2.bf16.msra.mxu0 0
      %483 = vmatprep.subr.bf16.mxu0 0
      %484 = vmatpush2.bf16.msra.mxu0 0
      %485 = vmatprep.subr.bf16.mxu0 0
      %486 = vmatpush2.bf16.msra.mxu0 0
      %487 = vmatprep.subr.bf16.mxu0 0
      %488 = vmatpush2.bf16.msra.mxu0 0
      %489 = vmatprep.mubr.bf16.mxu0 0
      %490 = vmatmul.mubr.bf16.gmra.mxu0 %v383
      %v491 = vpop.f32.mrf.mxu0
      %v492 = vadd.f32 %v236, %v491
      %v493 = vpop.f32.mrf.mxu0
      %v494 = vpop.f32.mrf.mxu0
      %v495 = vadd.f32 %v236, %v494
      %v496 = vpop.f32.mrf.mxu0
      %497 = vmatprep.mubr.bf16.mxu0 0
      %498 = vmatmul.mubr.bf16.gmra.mxu0 %v386
      %v499 = vpop.f32.mrf.mxu0
      %v500 = vadd.f32 %v236, %v499
      %v501 = vpop.f32.mrf.mxu0
      %v502 = vpop.f32.mrf.mxu0
      %v503 = vadd.f32 %v236, %v502
      %v504 = vpop.f32.mrf.mxu0
      %505 = vmatprep.mubr.bf16.mxu0 0
      %506 = vmatmul.mubr.bf16.gmra.mxu0 %v389
      %v507 = vpop.f32.mrf.mxu0
      %v508 = vadd.f32 %v236, %v507
      %v509 = vpop.f32.mrf.mxu0
      %v510 = vpop.f32.mrf.mxu0
      %v511 = vadd.f32 %v236, %v510
      %v512 = vpop.f32.mrf.mxu0
      %513 = vmatprep.mubr.bf16.mxu0 0
      %514 = vmatmul.mubr.bf16.gmra.mxu0 %v392
      %v515 = vpop.f32.mrf.mxu0
      %v516 = vadd.f32 %v236, %v515
      %v517 = vpop.f32.mrf.mxu0
      %v518 = vpop.f32.mrf.mxu0
      %v519 = vadd.f32 %v236, %v518
      %v520 = vpop.f32.mrf.mxu0
      %521 = vmatprep.mubr.bf16.mxu0 0
      %522 = vmatmul.mubr.bf16.gmra.mxu0 %v395
      %v523 = vpop.f32.mrf.mxu0
      %v524 = vadd.f32 %v236, %v523
      %v525 = vpop.f32.mrf.mxu0
      %v526 = vpop.f32.mrf.mxu0
      %v527 = vadd.f32 %v236, %v526
      %v528 = vpop.f32.mrf.mxu0
      %529 = vmatprep.mubr.bf16.mxu0 0
      %530 = vmatmul.mubr.bf16.gmra.mxu0 %v398
      %v531 = vpop.f32.mrf.mxu0
      %v532 = vadd.f32 %v236, %v531
      %v533 = vpop.f32.mrf.mxu0
      %v534 = vpop.f32.mrf.mxu0
      %v535 = vadd.f32 %v236, %v534
      %v536 = vpop.f32.mrf.mxu0
      %537 = vmatprep.mubr.bf16.mxu0 0
      %538 = vmatmul.mubr.bf16.gmra.mxu0 %v401
      %v539 = vpop.f32.mrf.mxu0
      %v540 = vadd.f32 %v236, %v539
      %v541 = vpop.f32.mrf.mxu0
      %v542 = vpop.f32.mrf.mxu0
      %v543 = vadd.f32 %v236, %v542
      %v544 = vpop.f32.mrf.mxu0
      %545 = vmatprep.mubr.bf16.mxu0 0
      %546 = vmatmul.mubr.bf16.gmra.mxu0 %v404
      %v547 = vpop.f32.mrf.mxu0
      %v548 = vadd.f32 %v236, %v547
      %v549 = vpop.f32.mrf.mxu0
      %v550 = vpop.f32.mrf.mxu0
      %v551 = vadd.f32 %v236, %v550
      %v552 = vpop.f32.mrf.mxu0
      %553 = vmatprep.mubr.bf16.mxu0 0
      %554 = vmatmul.mubr.bf16.gmra.mxu0 %v407
      %v555 = vpop.f32.mrf.mxu0
      %v556 = vadd.f32 %v236, %v555
      %v557 = vpop.f32.mrf.mxu0
      %v558 = vpop.f32.mrf.mxu0
      %v559 = vadd.f32 %v236, %v558
      %v560 = vpop.f32.mrf.mxu0
      %561 = vmatprep.mubr.bf16.mxu0 0
      %562 = vmatmul.mubr.bf16.gmra.mxu0 %v410
      %v563 = vpop.f32.mrf.mxu0
      %v564 = vadd.f32 %v236, %v563
      %v565 = vpop.f32.mrf.mxu0
      %v566 = vpop.f32.mrf.mxu0
      %v567 = vadd.f32 %v236, %v566
      %v568 = vpop.f32.mrf.mxu0
      %569 = vmatprep.mubr.bf16.mxu0 0
      %570 = vmatmul.mubr.bf16.gmra.mxu0 %v413
      %v571 = vpop.f32.mrf.mxu0
      %v572 = vadd.f32 %v236, %v571
      %v573 = vpop.f32.mrf.mxu0
      %v574 = vpop.f32.mrf.mxu0
      %v575 = vadd.f32 %v236, %v574
      %v576 = vpop.f32.mrf.mxu0
      %577 = vmatprep.mubr.bf16.mxu0 0
      %578 = vmatmul.mubr.bf16.gmra.mxu0 %v416
      %v579 = vpop.f32.mrf.mxu0
      %v580 = vadd.f32 %v236, %v579
      %v581 = vpop.f32.mrf.mxu0
      %v582 = vpop.f32.mrf.mxu0
      %v583 = vadd.f32 %v236, %v582
      %v584 = vpop.f32.mrf.mxu0
      %585 = vmatprep.mubr.bf16.mxu0 0
      %586 = vmatmul.mubr.bf16.gmra.mxu0 %v419
      %v587 = vpop.f32.mrf.mxu0
      %v588 = vadd.f32 %v236, %v587
      %v589 = vpop.f32.mrf.mxu0
      %v590 = vpop.f32.mrf.mxu0
      %v591 = vadd.f32 %v236, %v590
      %v592 = vpop.f32.mrf.mxu0
      %593 = vmatprep.mubr.bf16.mxu0 0
      %594 = vmatmul.mubr.bf16.gmra.mxu0 %v422
      %v595 = vpop.f32.mrf.mxu0
      %v596 = vadd.f32 %v236, %v595
      %v597 = vpop.f32.mrf.mxu0
      %v598 = vpop.f32.mrf.mxu0
      %v599 = vadd.f32 %v236, %v598
      %v600 = vpop.f32.mrf.mxu0
      %601 = vmatprep.mubr.bf16.mxu0 0
      %602 = vmatmul.mubr.bf16.gmra.mxu0 %v425
      %v603 = vpop.f32.mrf.mxu0
      %v604 = vadd.f32 %v236, %v603
      %v605 = vpop.f32.mrf.mxu0
      %v606 = vpop.f32.mrf.mxu0
      %v607 = vadd.f32 %v236, %v606
      %v608 = vpop.f32.mrf.mxu0
      %609 = vmatprep.mubr.bf16.mxu0 0
      %610 = vmatmul.mubr.bf16.gmra.mxu0 %v428
      %v611 = vpop.f32.mrf.mxu0
      %v612 = vadd.f32 %v236, %v611
      %v613 = vpop.f32.mrf.mxu0
      %v614 = vpop.f32.mrf.mxu0
      %v615 = vadd.f32 %v236, %v614
      %v616 = vpop.f32.mrf.mxu0
      %617 = vmatprep.mubr.bf16.mxu0 0
      %618 = vmatmul.mubr.bf16.gmra.mxu0 %v431
      %v619 = vpop.f32.mrf.mxu0
      %v620 = vadd.f32 %v236, %v619
      %v621 = vpop.f32.mrf.mxu0
      %v622 = vpop.f32.mrf.mxu0
      %v623 = vadd.f32 %v236, %v622
      %v624 = vpop.f32.mrf.mxu0
      %625 = vmatprep.mubr.bf16.mxu0 0
      %626 = vmatmul.mubr.bf16.gmra.mxu0 %v434
      %v627 = vpop.f32.mrf.mxu0
      %v628 = vadd.f32 %v236, %v627
      %v629 = vpop.f32.mrf.mxu0
      %v630 = vpop.f32.mrf.mxu0
      %v631 = vadd.f32 %v236, %v630
      %v632 = vpop.f32.mrf.mxu0
      %633 = vmatprep.mubr.bf16.mxu0 0
      %634 = vmatmul.mubr.bf16.gmra.mxu0 %v437
      %v635 = vpop.f32.mrf.mxu0
      %v636 = vadd.f32 %v236, %v635
      %v637 = vpop.f32.mrf.mxu0
      %v638 = vpop.f32.mrf.mxu0
      %v639 = vadd.f32 %v236, %v638
      %v640 = vpop.f32.mrf.mxu0
      %641 = vmatprep.mubr.bf16.mxu0 0
      %642 = vmatmul.mubr.bf16.gmra.mxu0 %v440
      %v643 = vpop.f32.mrf.mxu0
      %v644 = vadd.f32 %v236, %v643
      %v645 = vpop.f32.mrf.mxu0
      %v646 = vpop.f32.mrf.mxu0
      %v647 = vadd.f32 %v236, %v646
      %v648 = vpop.f32.mrf.mxu0
      %649 = vmatprep.mubr.bf16.mxu0 0
      %650 = vmatmul.mubr.bf16.gmra.mxu0 %v443
      %v651 = vpop.f32.mrf.mxu0
      %v652 = vadd.f32 %v236, %v651
      %v653 = vpop.f32.mrf.mxu0
      %v654 = vpop.f32.mrf.mxu0
      %v655 = vadd.f32 %v236, %v654
      %v656 = vpop.f32.mrf.mxu0
      %657 = vmatprep.mubr.bf16.mxu0 0
      %658 = vmatmul.mubr.bf16.gmra.mxu0 %v446
      %v659 = vpop.f32.mrf.mxu0
      %v660 = vadd.f32 %v236, %v659
      %v661 = vpop.f32.mrf.mxu0
      %v662 = vpop.f32.mrf.mxu0
      %v663 = vadd.f32 %v236, %v662
      %v664 = vpop.f32.mrf.mxu0
      %665 = vmatprep.mubr.bf16.mxu0 0
      %666 = vmatmul.mubr.bf16.gmra.mxu0 %v449
      %v667 = vpop.f32.mrf.mxu0
      %v668 = vadd.f32 %v236, %v667
      %v669 = vpop.f32.mrf.mxu0
      %v670 = vpop.f32.mrf.mxu0
      %v671 = vadd.f32 %v236, %v670
      %v672 = vpop.f32.mrf.mxu0
      %673 = vmatprep.mubr.bf16.mxu0 0
      %674 = vmatmul.mubr.bf16.gmra.mxu0 %v452
      %v675 = vpop.f32.mrf.mxu0
      %v676 = vadd.f32 %v236, %v675
      %v677 = vpop.f32.mrf.mxu0
      %v678 = vpop.f32.mrf.mxu0
      %v679 = vadd.f32 %v236, %v678
      %v680 = vpop.f32.mrf.mxu0
      %681 = vmatprep.mubr.bf16.mxu0 0
      %682 = vmatmul.mubr.bf16.gmra.mxu0 %v455
      %v683 = vpop.f32.mrf.mxu0
      %v684 = vadd.f32 %v236, %v683
      %v685 = vpop.f32.mrf.mxu0
      %v686 = vpop.f32.mrf.mxu0
      %v687 = vadd.f32 %v236, %v686
      %v688 = vpop.f32.mrf.mxu0
      %689 = vdwg.mxu0
      %690 = vst.msk [vmem:[%s172] sm:$0xff] %vm381, %v492
      %691 = vst.msk [vmem:[%s172 + $0x8] sm:$0xff] %vm381, %v495
      %692 = vst.msk [vmem:[%s172 + $0x10] sm:$0xff] %vm381, %v500
      %693 = vst.msk [vmem:[%s172 + $0x18] sm:$0xff] %vm381, %v503
      %694 = vst.msk [vmem:[%s172 + $0x20] sm:$0xff] %vm381, %v508
      %695 = vst.msk [vmem:[%s172 + $0x28] sm:$0xff] %vm381, %v511
      %696 = vst.msk [vmem:[%s172 + $0x30] sm:$0xff] %vm381, %v516
      %697 = vst.msk [vmem:[%s172 + $0x38] sm:$0xff] %vm381, %v519
      %698 = vst.msk [vmem:[%s172 + $0x40] sm:$0xff] %vm381, %v524
      %699 = vst.msk [vmem:[%s172 + $0x48] sm:$0xff] %vm381, %v527
      %700 = vst.msk [vmem:[%s172 + $0x50] sm:$0xff] %vm381, %v532
      %701 = vst.msk [vmem:[%s172 + $0x58] sm:$0xff] %vm381, %v535
      %702 = vst.msk [vmem:[%s172 + $0x60] sm:$0xff] %vm381, %v540
      %703 = vst.msk [vmem:[%s172 + $0x68] sm:$0xff] %vm381, %v543
      %704 = vst.msk [vmem:[%s172 + $0x70] sm:$0xff] %vm381, %v548
      %705 = vst.msk [vmem:[%s172 + $0x78] sm:$0xff] %vm381, %v551
      %706 = vst.msk [vmem:[%s172 + $0x80] sm:$0xff] %vm381, %v556
      %707 = vst.msk [vmem:[%s172 + $0x88] sm:$0xff] %vm381, %v559
      %708 = vst.msk [vmem:[%s172 + $0x90] sm:$0xff] %vm381, %v564
      %709 = vst.msk [vmem:[%s172 + $0x98] sm:$0xff] %vm381, %v567
      %710 = vst.msk [vmem:[%s172 + $0xa0] sm:$0xff] %vm381, %v572
      %711 = vst.msk [vmem:[%s172 + $0xa8] sm:$0xff] %vm381, %v575
      %712 = vst.msk [vmem:[%s172 + $0xb0] sm:$0xff] %vm381, %v580
      %713 = vst.msk [vmem:[%s172 + $0xb8] sm:$0xff] %vm381, %v583
      %714 = vst.msk [vmem:[%s172 + $0xc0] sm:$0xff] %vm381, %v588
      %715 = vst.msk [vmem:[%s172 + $0xc8] sm:$0xff] %vm381, %v591
      %716 = vst.msk [vmem:[%s172 + $0xd0] sm:$0xff] %vm381, %v596
      %717 = vst.msk [vmem:[%s172 + $0xd8] sm:$0xff] %vm381, %v599
      %718 = vst.msk [vmem:[%s172 + $0xe0] sm:$0xff] %vm381, %v604
      %719 = vst.msk [vmem:[%s172 + $0xe8] sm:$0xff] %vm381, %v607
      %720 = vst.msk [vmem:[%s172 + $0xf0] sm:$0xff] %vm381, %v612
      %721 = vst.msk [vmem:[%s172 + $0xf8] sm:$0xff] %vm381, %v615
      %722 = vst.msk [vmem:[%s172 + $0x100] sm:$0xff] %vm381, %v620
      %723 = vst.msk [vmem:[%s172 + $0x108] sm:$0xff] %vm381, %v623
      %724 = vst.msk [vmem:[%s172 + $0x110] sm:$0xff] %vm381, %v628
      %725 = vst.msk [vmem:[%s172 + $0x118] sm:$0xff] %vm381, %v631
      %726 = vst.msk [vmem:[%s172 + $0x120] sm:$0xff] %vm381, %v636
      %727 = vst.msk [vmem:[%s172 + $0x128] sm:$0xff] %vm381, %v639
      %728 = vst.msk [vmem:[%s172 + $0x130] sm:$0xff] %vm381, %v644
      %729 = vst.msk [vmem:[%s172 + $0x138] sm:$0xff] %vm381, %v647
      %730 = vst.msk [vmem:[%s172 + $0x140] sm:$0xff] %vm381, %v652
      %731 = vst.msk [vmem:[%s172 + $0x148] sm:$0xff] %vm381, %v655
      %732 = vst.msk [vmem:[%s172 + $0x150] sm:$0xff] %vm381, %v660
      %733 = vst.msk [vmem:[%s172 + $0x158] sm:$0xff] %vm381, %v663
      %734 = vst.msk [vmem:[%s172 + $0x160] sm:$0xff] %vm381, %v668
      %735 = vst.msk [vmem:[%s172 + $0x168] sm:$0xff] %vm381, %v671
      %736 = vst.msk [vmem:[%s172 + $0x170] sm:$0xff] %vm381, %v676
      %737 = vst.msk [vmem:[%s172 + $0x178] sm:$0xff] %vm381, %v679
      %738 = vst.msk [vmem:[%s172 + $0x180] sm:$0xff] %vm381, %v684
      %739 = vst.msk [vmem:[%s172 + $0x188] sm:$0xff] %vm381, %v687
      %s740 = smul.u32 50, %s14
      %p741 = scmp.lt.s32.totalorder %s740, 99
      %s742 = scalar_select %p741, %s740, 99
      %s743 = smul.addr %s742, 8
      %s744 = scalar_lea.vmem %s3, %s743
      // Predicated region
      $region33: #{tpu_custom_call.1} parent=31 // pred_check
        %p745 = pneg %p100
      $region34: #{tpu_custom_call.1} parent=31 // pred_check_branch
        %747 = sbr.rel (%p745) target = $region36
      $region35: #{tpu_custom_call.1} parent=31 // pred_region
        %s748 = smul.u32 50, %s14
      $region36: #{tpu_custom_call.1} parent=31 // pred_fallthru
        _
    $region32: #{tpu_custom_call.1} parent=5 // pred_fallthru
      _
    %p749 = scmp.le.s32.totalorder 2, %s9
    // Predicated region
    $region37: #{tpu_custom_call.1} parent=5 // pred_check
      %p750 = pneg %p749
    $region38: #{tpu_custom_call.1} parent=5 // pred_check_branch
      %752 = sbr.rel (%p750) target = $region40
    $region39: #{tpu_custom_call.1} parent=5 // pred_region
      %s753 = ssub.s32 %s9, 2
      // Predicated region
      $region41: #{tpu_custom_call.1} parent=39 // pred_check
        %p754 = pneg %p106
      $region42: #{tpu_custom_call.1} parent=39 // pred_check_branch
        %756 = sbr.rel (%p754) target = $region44
      $region43: #{tpu_custom_call.1} parent=39 // pred_region
        %s757 = smul.u32 50, %s15
        %p758 = scmp.lt.s32.totalorder %s757, 99
        %s759 = scalar_select %p758, %s757, 99
        %s760 = smul.addr %s759, 8
        %s761 = scalar_lea.vmem %s3, %s760
      $region44: #{tpu_custom_call.1} parent=39 // pred_fallthru
        _
    $region40: #{tpu_custom_call.1} parent=5 // pred_fallthru
      _
  $region6: #{tpu_custom_call.1} parent=0 // loop_footer
    %s13 = sadd.s32 1, %s9
  $region7: #{tpu_custom_call.1} parent=0 // loop_footer_branch
    %8 = sbr.rel target = $region3
  $region8: #{tpu_custom_call.1} parent=0 // loop_exit
    _

</llo_original>
